<compile_context>
chip_gen: v7x
topology: tpu7x:2x2x1
jax: 0.10.0
libtpu: 0.0.40
codegen_flags: <defaults>
</compile_context>

<pallas_src>
import jax
import jax.numpy as jnp
from jax.experimental import pallas as pl
from jax.experimental.pallas import tpu as pltpu


def _round_up(x, m):
    return (x + m - 1) // m * m


def _choose_batch_tile(B, block_b):
    """Pick (tb, B_pad): batch tile (multiple of 8, <= block_b) and padded batch.

    Keeps the grid >= 2 steps whenever the 8-aligned batch allows it (dual-TC
    sharding on v7x) while minimizing padded-row waste at mid-size batches.
    """
    B8 = _round_up(max(B, 8), 8)
    if B8 <= 8:
        return B8, B8
    n_steps = max(2, -(-B8 // block_b))          # ceil-div, at least 2 steps
    tb = _round_up(-(-B8 // n_steps), 8)
    tb = min(tb, _round_up(block_b, 8))
    B_pad = _round_up(B8, tb)
    return tb, B_pad


def _actor_kernel(ma_ref, x_ref, w1_ref, b1_ref, w2_ref, b2_ref, w3_ref, b3_ref,
                  o_ref):
    """Fused 3-layer MLP: Linear->ReLU->Linear->ReLU->Linear->Tanh, scaled.

    Weights are pre-transposed [in_dim, out_dim]; activations are cast to the
    weight dtype (f32 or bf16) before each MXU matmul; accumulation is f32.
    """
    cdt = w1_ref.dtype
    max_action = ma_ref[0, 0]                                   # SMEM scalar

    x = x_ref[...].astype(cdt)
    h1 = jnp.dot(x, w1_ref[...], preferred_element_type=jnp.float32) + b1_ref[...]
    h1 = jnp.maximum(h1, 0.0)                                   # ReLU

    h2 = jnp.dot(h1.astype(cdt), w2_ref[...],
                 preferred_element_type=jnp.float32) + b2_ref[...]
    h2 = jnp.maximum(h2, 0.0)                                   # ReLU

    a = jnp.dot(h2.astype(cdt), w3_ref[...],
                preferred_element_type=jnp.float32) + b3_ref[...]
    o_ref[...] = (max_action * jnp.tanh(a)).astype(o_ref.dtype)


def actor_forward(state, params, max_action, *, action_dim, block_b=1024,
                  use_pallas=None):
    """state: [B, state_dim] f32. Returns [B, action_dim] f32 actions."""
    B, state_dim = state.shape
    h1 = params["w1"].shape[1]
    h2 = params["w2"].shape[1]
    assert params["w3"].shape[1] == action_dim

    if use_pallas is None:
        # Tiny acting batches are launch-overhead bound; let XLA fuse them.
        use_pallas = B > 64
    if not use_pallas:
        return actor_reference(state, params, max_action)

    tb, B_pad = _choose_batch_tile(B, block_b)
    if B_pad != B:
        state = jnp.pad(state, ((0, B_pad - B), (0, 0)))

    grid = (B_pad // tb,)
    const = lambda i: (0, 0)            # weights/biases: same block every step

    param_bytes = sum(int(p.size) * p.dtype.itemsize for p in params.values())
    cost = pl.CostEstimate(
        flops=2 * B_pad * (state_dim * h1 + h1 * h2 + h2 * action_dim),
        transcendentals=B_pad * action_dim,
        bytes_accessed=4 * B_pad * (state_dim + action_dim) + param_bytes,
    )

    ma = jnp.full((1, 1), max_action, dtype=jnp.float32)

    out = pl.pallas_call(
        _actor_kernel,
        out_shape=jax.ShapeDtypeStruct((B_pad, action_dim), jnp.float32),
        grid=grid,
        in_specs=[
            pl.BlockSpec(memory_space=pltpu.MemorySpace.SMEM),  # max_action
            pl.BlockSpec((tb, state_dim), lambda i: (i, 0)),    # state (tiled)
            pl.BlockSpec((state_dim, h1), const),               # w1 (resident)
            pl.BlockSpec((1, h1), const),                       # b1
            pl.BlockSpec((h1, h2), const),                      # w2
            pl.BlockSpec((1, h2), const),                       # b2
            pl.BlockSpec((h2, action_dim), const),              # w3 (narrow)
            pl.BlockSpec((1, action_dim), const),               # b3
        ],
        # Narrow (tb, action_dim) writeback: 32x less output HBM traffic than
        # a 128-lane-padded slab; last dim equals the full array dim.
        out_specs=pl.BlockSpec((tb, action_dim), lambda i: (i, 0)),
        compiler_params=pltpu.CompilerParams(
            dimension_semantics=("parallel",)),
        cost_estimate=cost,
    )(ma, state,
      params["w1"], params["b1"],
      params["w2"], params["b2"],
      params["w3"], params["b3"])

    return out[:B]                       # drop batch padding (free slice)


def init_actor_params(key, state_dim, action_dim, hidden=128,
                      param_dtype=jnp.float32):
    """PyTorch-style uniform +-1/sqrt(fan_in) init.

    Weights stored pre-transposed as [in_dim, out_dim] (x @ W + b on the MXU),
    optionally cast to bf16 for native MXU rate; biases stay f32 (added to the
    f32 accumulator in-kernel).
    """
    ks = jax.random.split(key, 6)

    def unif(k, shape, fan_in):
        bound = 1.0 / jnp.sqrt(jnp.float32(fan_in))
        return jax.random.uniform(k, shape, jnp.float32, -bound, bound)

    return {
        "w1": unif(ks[0], (state_dim, hidden), state_dim).astype(param_dtype),
        "b1": unif(ks[1], (1, hidden), state_dim),
        "w2": unif(ks[2], (hidden, hidden), hidden).astype(param_dtype),
        "b2": unif(ks[3], (1, hidden), hidden),
        "w3": unif(ks[4], (hidden, action_dim), hidden).astype(param_dtype),
        "b3": unif(ks[5], (1, action_dim), hidden),
    }


def actor_reference(state, params, max_action):
    """Pure-jnp reference (also the tiny-batch fallback path)."""
    h1 = jnp.maximum(state @ params["w1"].astype(jnp.float32) + params["b1"], 0.0)
    h2 = jnp.maximum(h1 @ params["w2"].astype(jnp.float32) + params["b2"], 0.0)
    return max_action * jnp.tanh(h2 @ params["w3"].astype(jnp.float32) + params["b3"])


if __name__ == "__main__":
    key = jax.random.PRNGKey(0)
    k1, k2, k3, kp = jax.random.split(key, 4)

    state_dim = 16
    action_dim = 4
    max_action = 2.0
    params = init_actor_params(kp, state_dim, action_dim)

    # 1) Small acting batch forced through the Pallas path (single 8-row tile).
    s_small = jax.random.normal(k1, (8, state_dim), dtype=jnp.float32)
    out1 = actor_forward(s_small, params, max_action, action_dim=action_dim,
                         use_pallas=True)
    out1 = jax.block_until_ready(out1)
    ref1 = actor_reference(s_small, params, max_action)
    assert out1.shape == (8, action_dim)
    assert jnp.allclose(out1, ref1, atol=1e-5, rtol=1e-5)

    # 2) Mid-size, non-aligned batch: batch-aware tiling -> 2 x 152-row steps
    #    on a "parallel" grid with VMEM-resident weights, narrow writeback.
    s_mid = jax.random.normal(k2, (300, state_dim), dtype=jnp.float32)
    out2 = actor_forward(s_mid, params, max_action, action_dim=action_dim)
    out2 = jax.block_until_ready(out2)
    ref2 = actor_reference(s_mid, params, max_action)
    assert out2.shape == (300, action_dim)
    assert jnp.allclose(out2, ref2, atol=1e-5, rtol=1e-5)

    # 3) Tiny batch auto-dispatch: falls back to plain jnp (overhead regime).
    s_tiny = jax.random.normal(k3, (4, state_dim), dtype=jnp.float32)
    out3 = actor_forward(s_tiny, params, max_action, action_dim=action_dim)
    out3 = jax.block_until_ready(out3)
    assert jnp.allclose(out3, actor_reference(s_tiny, params, max_action),
                        atol=1e-5, rtol=1e-5)

    # 4) bf16 weights (native MXU rate); looser tolerance vs f32 reference.
    params_bf16 = init_actor_params(kp, state_dim, action_dim,
                                    param_dtype=jnp.bfloat16)
    out4 = actor_forward(s_mid, params_bf16, max_action, action_dim=action_dim)
    out4 = jax.block_until_ready(out4)
    ref4 = actor_reference(s_mid, params_bf16, max_action)
    assert jnp.allclose(out4, ref4, atol=5e-2, rtol=5e-2)

    print("KERNEL_OK")
</pallas_src>

<mosaic_0001>
module attributes {stable_mosaic.version = 11 : i64} {
  func.func @_actor_kernel(%arg0: i32, %arg1: memref<1x1xf32, #tpu.memory_space<smem>>, %arg2: memref<8x16xf32, #tpu.memory_space<vmem>>, %arg3: memref<16x128xf32, #tpu.memory_space<vmem>>, %arg4: memref<1x128xf32, #tpu.memory_space<vmem>>, %arg5: memref<128x128xf32, #tpu.memory_space<vmem>>, %arg6: memref<1x128xf32, #tpu.memory_space<vmem>>, %arg7: memref<128x4xf32, #tpu.memory_space<vmem>>, %arg8: memref<1x4xf32, #tpu.memory_space<vmem>>, %arg9: memref<8x4xf32, #tpu.memory_space<vmem>>) attributes {dimension_semantics = [#tpu.dimension_semantics<parallel>], iteration_bounds = array<i64: 1>, scalar_prefetch = 0 : i64, scratch_operands = 0 : i64, tpu.core_type = #tpu.core_type<tc>, window_params = [{transform_indices = @transform_0, window_bounds = array<i64: 1, 1>}, {transform_indices = @transform_1, window_bounds = array<i64: 8, 16>}, {pipeline_mode = #tpu.pipeline_mode<synchronous>, transform_indices = @transform_2, window_bounds = array<i64: 16, 128>}, {pipeline_mode = #tpu.pipeline_mode<synchronous>, transform_indices = @transform_3, window_bounds = array<i64: 1, 128>}, {pipeline_mode = #tpu.pipeline_mode<synchronous>, transform_indices = @transform_4, window_bounds = array<i64: 128, 128>}, {pipeline_mode = #tpu.pipeline_mode<synchronous>, transform_indices = @transform_5, window_bounds = array<i64: 1, 128>}, {pipeline_mode = #tpu.pipeline_mode<synchronous>, transform_indices = @transform_6, window_bounds = array<i64: 128, 4>}, {pipeline_mode = #tpu.pipeline_mode<synchronous>, transform_indices = @transform_7, window_bounds = array<i64: 1, 4>}, {transform_indices = @transform_8, window_bounds = array<i64: 8, 4>}]} {
    %c0 = arith.constant 0 : index
    %c0_0 = arith.constant 0 : index
    %0 = memref.load %arg1[%c0, %c0_0] : memref<1x1xf32, #tpu.memory_space<smem>>
    %c0_1 = arith.constant 0 : index
    %c0_2 = arith.constant 0 : index
    %1 = vector.load %arg2[%c0_1, %c0_2] : memref<8x16xf32, #tpu.memory_space<vmem>>, vector<8x16xf32>
    %c0_3 = arith.constant 0 : index
    %c0_4 = arith.constant 0 : index
    %2 = vector.load %arg3[%c0_3, %c0_4] : memref<16x128xf32, #tpu.memory_space<vmem>>, vector<16x128xf32>
    %cst = arith.constant dense<0.000000e+00> : vector<8x128xf32>
    %3 = tpu.matmul %1, %2, %cst {dimension_numbers = #tpu.dot_dimension_numbers<[1], [0], [0], [1], [0, 0, 1, 1], [], []>} : vector<8x16xf32>, vector<16x128xf32>, vector<8x128xf32> -> vector<8x128xf32>
    %c0_5 = arith.constant 0 : index
    %c0_6 = arith.constant 0 : index
    %4 = vector.load %arg4[%c0_5, %c0_6] : memref<1x128xf32, #tpu.memory_space<vmem>>, vector<1x128xf32>
    %5 = vector.broadcast %4 : vector<1x128xf32> to vector<8x128xf32>
    %6 = arith.addf %3, %5 : vector<8x128xf32>
    %cst_7 = arith.constant 0.000000e+00 : f32
    %7 = vector.broadcast %cst_7 : f32 to vector<8x128xf32>
    %8 = arith.maximumf %6, %7 : vector<8x128xf32>
    %c0_8 = arith.constant 0 : index
    %c0_9 = arith.constant 0 : index
    %9 = vector.load %arg5[%c0_8, %c0_9] : memref<128x128xf32, #tpu.memory_space<vmem>>, vector<128x128xf32>
    %cst_10 = arith.constant dense<0.000000e+00> : vector<8x128xf32>
    %10 = tpu.matmul %8, %9, %cst_10 {dimension_numbers = #tpu.dot_dimension_numbers<[1], [0], [0], [1], [0, 0, 1, 1], [], []>} : vector<8x128xf32>, vector<128x128xf32>, vector<8x128xf32> -> vector<8x128xf32>
    %c0_11 = arith.constant 0 : index
    %c0_12 = arith.constant 0 : index
    %11 = vector.load %arg6[%c0_11, %c0_12] : memref<1x128xf32, #tpu.memory_space<vmem>>, vector<1x128xf32>
    %12 = vector.broadcast %11 : vector<1x128xf32> to vector<8x128xf32>
    %13 = arith.addf %10, %12 : vector<8x128xf32>
    %cst_13 = arith.constant 0.000000e+00 : f32
    %14 = vector.broadcast %cst_13 : f32 to vector<8x128xf32>
    %15 = arith.maximumf %13, %14 : vector<8x128xf32>
    %c0_14 = arith.constant 0 : index
    %c0_15 = arith.constant 0 : index
    %16 = vector.load %arg7[%c0_14, %c0_15] : memref<128x4xf32, #tpu.memory_space<vmem>>, vector<128x4xf32>
    %cst_16 = arith.constant dense<0.000000e+00> : vector<8x4xf32>
    %17 = tpu.matmul %15, %16, %cst_16 {dimension_numbers = #tpu.dot_dimension_numbers<[1], [0], [0], [1], [0, 0, 1, 1], [], []>} : vector<8x128xf32>, vector<128x4xf32>, vector<8x4xf32> -> vector<8x4xf32>
    %c0_17 = arith.constant 0 : index
    %c0_18 = arith.constant 0 : index
    %18 = vector.load %arg8[%c0_17, %c0_18] : memref<1x4xf32, #tpu.memory_space<vmem>>, vector<1x4xf32>
    %19 = vector.broadcast %18 : vector<1x4xf32> to vector<8x4xf32>
    %20 = arith.addf %17, %19 : vector<8x4xf32>
    %21 = math.tanh %20 : vector<8x4xf32>
    %22 = vector.broadcast %0 : f32 to vector<8x4xf32>
    %23 = arith.mulf %22, %21 : vector<8x4xf32>
    %c0_19 = arith.constant 0 : index
    %c0_20 = arith.constant 0 : index
    %24 = vector.load %arg9[%c0_19, %c0_20] : memref<8x4xf32, #tpu.memory_space<vmem>>, vector<8x4xf32>
    tpu.vector_store %arg9[%c0_19, %c0_20], %23 {strides = array<i32>} : memref<8x4xf32, #tpu.memory_space<vmem>>, vector<8x4xf32>,
    return
  }
  func.func @transform_0(%arg0: i32) -> (i32, i32) {
    %c0_i32 = arith.constant 0 : i32
    %c0_i32_0 = arith.constant 0 : i32
    %c0_i32_1 = arith.constant 0 : i32
    return %c0_i32, %c0_i32_0 : i32, i32
  }
  func.func @transform_1(%arg0: i32) -> (i32, i32) {
    %c0_i32 = arith.constant 0 : i32
    %c0_i32_0 = arith.constant 0 : i32
    return %arg0, %c0_i32 : i32, i32
  }
  func.func @transform_2(%arg0: i32) -> (i32, i32) {
    %c0_i32 = arith.constant 0 : i32
    %c0_i32_0 = arith.constant 0 : i32
    %c0_i32_1 = arith.constant 0 : i32
    return %c0_i32, %c0_i32_0 : i32, i32
  }
  func.func @transform_3(%arg0: i32) -> (i32, i32) {
    %c0_i32 = arith.constant 0 : i32
    %c0_i32_0 = arith.constant 0 : i32
    %c0_i32_1 = arith.constant 0 : i32
    return %c0_i32, %c0_i32_0 : i32, i32
  }
  func.func @transform_4(%arg0: i32) -> (i32, i32) {
    %c0_i32 = arith.constant 0 : i32
    %c0_i32_0 = arith.constant 0 : i32
    %c0_i32_1 = arith.constant 0 : i32
    return %c0_i32, %c0_i32_0 : i32, i32
  }
  func.func @transform_5(%arg0: i32) -> (i32, i32) {
    %c0_i32 = arith.constant 0 : i32
    %c0_i32_0 = arith.constant 0 : i32
    %c0_i32_1 = arith.constant 0 : i32
    return %c0_i32, %c0_i32_0 : i32, i32
  }
  func.func @transform_6(%arg0: i32) -> (i32, i32) {
    %c0_i32 = arith.constant 0 : i32
    %c0_i32_0 = arith.constant 0 : i32
    %c0_i32_1 = arith.constant 0 : i32
    return %c0_i32, %c0_i32_0 : i32, i32
  }
  func.func @transform_7(%arg0: i32) -> (i32, i32) {
    %c0_i32 = arith.constant 0 : i32
    %c0_i32_0 = arith.constant 0 : i32
    %c0_i32_1 = arith.constant 0 : i32
    return %c0_i32, %c0_i32_0 : i32, i32
  }
  func.func @transform_8(%arg0: i32) -> (i32, i32) {
    %c0_i32 = arith.constant 0 : i32
    %c0_i32_0 = arith.constant 0 : i32
    return %arg0, %c0_i32 : i32, i32
  }
}

</mosaic_0001>

<llo_original>
// kernel: tpu_custom_call.1
$region0: #{tpu_custom_call.1}
  #allocation0 [shape = 'u32[]', space=smem, size = 0x4, offset = 0x4, fixed_abs, tag = 'smem constant byte address 0x4 - core index']
  #allocation1 [shape = 'u32[144,128]{1,0:T(1,128)}', space=vmem, size = 0x12000, scoped, tag = 'internal scratch']
  #allocation2 [shape = 'f32[1,1]{1,0:T(1,128)S(6)}', space=smem, size = 0x200, scoped, tag = 'scoped memory for tpu_custom_call.1']
  %s0 = inlined_call_operand.<no memory space> [shape: f32[1,1], index: 0, kind: input, shape index: {}]
  %s1 = inlined_call_operand.hbm [shape: f32[8,16], index: 1, kind: input, shape index: {}]
  %s2 = inlined_call_operand.vmem [shape: f32[16,128], index: 2, kind: input, shape index: {}]
  %s3 = inlined_call_operand.vmem [shape: f32[1,128], index: 3, kind: input, shape index: {}]
  %s4 = inlined_call_operand.vmem [shape: f32[128,128], index: 4, kind: input, shape index: {}]
  %s5 = inlined_call_operand.vmem [shape: f32[1,128], index: 5, kind: input, shape index: {}]
  %s6 = inlined_call_operand.vmem [shape: f32[128,4], index: 6, kind: input, shape index: {}]
  %s7 = inlined_call_operand.vmem [shape: f32[1,4], index: 7, kind: input, shape index: {}]
  %s8 = inlined_call_operand.vmem [shape: f32[8,4], index: 8, kind: output, shape index: {}]
  %s9 = sld [smem:[#allocation0]]
  $region46: #{tpu_custom_call.1} parent=0
    _
  %s11 = ssub.s32 1, %s9
  %s12 = scalar_select 0, %s11, %s9
  %13 = sst [smem:[#allocation2]] %s0
  $region1: #{tpu_custom_call.1} parent=0
    #allocation3 [shape = 'u8[4096]{0}', space=vmem, size = 0x1000, scoped, tag = 'input window, operand 1, single buffered']
    #allocation4 [shape = 's32[1]{0}', space=sflag, size = 0x4, scoped, tag = 'scoped memory for tpu_custom_call.1']
    %14 = vsyncpa [#allocation4], 0
    // Predicated region
    $region2: #{tpu_custom_call.1} parent=1 // pred_check
      _
    $region3: #{tpu_custom_call.1} parent=1 // pred_check_branch
      %16 = sbr.rel (0) target = $region5
    $region4: #{tpu_custom_call.1} parent=1 // pred_region
      _
    $region5: #{tpu_custom_call.1} parent=1 // pred_fallthru
      _
    // Predicated region
    $region6: #{tpu_custom_call.1} parent=1 // pred_check
      _
    $region7: #{tpu_custom_call.1} parent=1 // pred_check_branch
      %18 = sbr.rel (0) target = $region9
    $region8: #{tpu_custom_call.1} parent=1 // pred_region
      %s20 = ssub.s32 128, 128
      %21 = vsyncadd [#allocation4], %s20
      %s23 = sshll.u32 [#allocation3], 4
      %s24 = int_to_ptr.vmem [resolvable:$true] %s23
      %26 = dma.hbm_to_vmem [thread:$0]  %s1, 128, %s24, [#allocation4]
    $region9: #{tpu_custom_call.1} parent=1 // pred_fallthru
      _
    // Predicated region
    $region10: #{tpu_custom_call.1} parent=1 // pred_check
      _
    $region11: #{tpu_custom_call.1} parent=1 // pred_check_branch
      %28 = sbr.rel (0) target = $region13
    $region12: #{tpu_custom_call.1} parent=1 // pred_region
      _
    $region13: #{tpu_custom_call.1} parent=1 // pred_fallthru
      _
    // Predicated region
    $region14: #{tpu_custom_call.1} parent=1 // pred_check
      _
    $region15: #{tpu_custom_call.1} parent=1 // pred_check_branch
      %30 = sbr.rel (0) target = $region17
    $region16: #{tpu_custom_call.1} parent=1 // pred_region
      _
    $region17: #{tpu_custom_call.1} parent=1 // pred_fallthru
      _
    // Predicated region
    $region18: #{tpu_custom_call.1} parent=1 // pred_check
      _
    $region19: #{tpu_custom_call.1} parent=1 // pred_check_branch
      %32 = sbr.rel (0) target = $region21
    $region20: #{tpu_custom_call.1} parent=1 // pred_region
      _
    $region21: #{tpu_custom_call.1} parent=1 // pred_fallthru
      _
    // Predicated region
    $region22: #{tpu_custom_call.1} parent=1 // pred_check
      _
    $region23: #{tpu_custom_call.1} parent=1 // pred_check_branch
      %34 = sbr.rel (0) target = $region25
    $region24: #{tpu_custom_call.1} parent=1 // pred_region
      _
    $region25: #{tpu_custom_call.1} parent=1 // pred_fallthru
      _
    // Predicated region
    $region26: #{tpu_custom_call.1} parent=1 // pred_check
      _
    $region27: #{tpu_custom_call.1} parent=1 // pred_check_branch
      %36 = sbr.rel (0) target = $region29
    $region28: #{tpu_custom_call.1} parent=1 // pred_region
      _
    $region29: #{tpu_custom_call.1} parent=1 // pred_fallthru
      _
    // Predicated region
    $region30: #{tpu_custom_call.1} parent=1 // pred_check
      _
    $region31: #{tpu_custom_call.1} parent=1 // pred_check_branch
      %38 = sbr.rel (0) target = $region33
    $region32: #{tpu_custom_call.1} parent=1 // pred_region
      _
    $region33: #{tpu_custom_call.1} parent=1 // pred_fallthru
      _
    // Predicated region
    $region34: #{tpu_custom_call.1} parent=1 // pred_check
      _
    $region35: #{tpu_custom_call.1} parent=1 // pred_check_branch
      %40 = sbr.rel (0) target = $region37
    $region36: #{tpu_custom_call.1} parent=1 // pred_region
      %41 = dma.done [#allocation4], 128
    $region37: #{tpu_custom_call.1} parent=1 // pred_fallthru
      _
    %s42 = sld [smem:[#allocation2]]
    %v43 = vld [vmem:[#allocation3] sm:$0xff]
    %v44 = vld [vmem:[%s2] sm:$0xff]
    %v45 = vld [vmem:[%s2 + $0x8] sm:$0xff]
    %v46 = vld [vmem:[%s3] sm:$0x1]
    %v48 = vlaneseq
    %v49 = vshrl.u32 %v48, 7
    %v50 = vsub.s32 0, %v49
    %v51 = vrot.slane %v46, %v50
    %vm53 = vcmask 130048
    %v55 = vsel %vm53, %v43, 0
    %57 = vmatprep.subr.mxu0 0.0
    %58 = vmatpush1.msra.mxu0 %v44
    %59 = vmatprep.subr.mxu0 0.0
    %60 = vmatpush1.msra.mxu0 %v45
    %61 = vmatprep.subr.mxu0 0.0
    %62 = vmatpush1.msra.mxu0 0.0
    %63 = vmatprep.subr.mxu0 0.0
    %64 = vmatpush1.msra.mxu0 0.0
    %65 = vmatprep.subr.mxu0 0.0
    %66 = vmatpush1.msra.mxu0 0.0
    %67 = vmatprep.subr.mxu0 0.0
    %68 = vmatpush1.msra.mxu0 0.0
    %69 = vmatprep.subr.mxu0 0.0
    %70 = vmatpush1.msra.mxu0 0.0
    %71 = vmatprep.subr.mxu0 0.0
    %72 = vmatpush1.msra.mxu0 0.0
    %73 = vmatprep.subr.mxu0 0.0
    %74 = vmatpush1.msra.mxu0 0.0
    %75 = vmatprep.subr.mxu0 0.0
    %76 = vmatpush1.msra.mxu0 0.0
    %77 = vmatprep.subr.mxu0 0.0
    %78 = vmatpush1.msra.mxu0 0.0
    %79 = vmatprep.subr.mxu0 0.0
    %80 = vmatpush1.msra.mxu0 0.0
    %81 = vmatprep.subr.mxu0 0.0
    %82 = vmatpush1.msra.mxu0 0.0
    %83 = vmatprep.subr.mxu0 0.0
    %84 = vmatpush1.msra.mxu0 0.0
    %85 = vmatprep.subr.mxu0 0.0
    %86 = vmatpush1.msra.mxu0 0.0
    %87 = vmatprep.subr.mxu0 0.0
    %88 = vmatpush1.msra.mxu0 0.0
    %89 = vmatprep.subr.mxu0 0.0
    %90 = vmatpush1.msra.mxu0 0.0
    %91 = vmatprep.subr.mxu0 0.0
    %92 = vmatpush1.msra.mxu0 0.0
    %93 = vmatprep.subr.mxu0 0.0
    %94 = vmatpush1.msra.mxu0 0.0
    %95 = vmatprep.subr.mxu0 0.0
    %96 = vmatpush1.msra.mxu0 0.0
    %97 = vmatprep.subr.mxu0 0.0
    %98 = vmatpush1.msra.mxu0 0.0
    %99 = vmatprep.subr.mxu0 0.0
    %100 = vmatpush1.msra.mxu0 0.0
    %101 = vmatprep.subr.mxu0 0.0
    %102 = vmatpush1.msra.mxu0 0.0
    %103 = vmatprep.subr.mxu0 0.0
    %104 = vmatpush1.msra.mxu0 0.0
    %105 = vmatprep.subr.mxu0 0.0
    %106 = vmatpush1.msra.mxu0 0.0
    %107 = vmatprep.subr.mxu0 0.0
    %108 = vmatpush1.msra.mxu0 0.0
    %109 = vmatprep.subr.mxu0 0.0
    %110 = vmatpush1.msra.mxu0 0.0
    %111 = vmatprep.subr.mxu0 0.0
    %112 = vmatpush1.msra.mxu0 0.0
    %113 = vmatprep.subr.mxu0 0.0
    %114 = vmatpush1.msra.mxu0 0.0
    %115 = vmatprep.subr.mxu0 0.0
    %116 = vmatpush1.msra.mxu0 0.0
    %117 = vmatprep.subr.mxu0 0.0
    %118 = vmatpush1.msra.mxu0 0.0
    %119 = vmatprep.subr.mxu0 0.0
    %120 = vmatpush1.msra.mxu0 0.0
    %121 = vmatprep.mubr.f32.mxu0 0.0
    %122 = vmatmul.mubr.f32.gmra.mrb[0].mxu0 %v55
    %v123 = vpop.f32.mrb[0].mxu0
    %v124 = vadd.f32 %v51, %v123
    %v125 = vpop.f32.mrb[0].mxu0
    %126 = vdwg.mxu0
    %v127 = vmax.f32 %v124, 0.0
    %v128 = vld [vmem:[%s4] sm:$0xff]
    %v129 = vld [vmem:[%s4 + $0x8] sm:$0xff]
    %v130 = vld [vmem:[%s4 + $0x10] sm:$0xff]
    %v131 = vld [vmem:[%s4 + $0x18] sm:$0xff]
    %v132 = vld [vmem:[%s4 + $0x20] sm:$0xff]
    %v133 = vld [vmem:[%s4 + $0x28] sm:$0xff]
    %v134 = vld [vmem:[%s4 + $0x30] sm:$0xff]
    %v135 = vld [vmem:[%s4 + $0x38] sm:$0xff]
    %v136 = vld [vmem:[%s4 + $0x40] sm:$0xff]
    %v137 = vld [vmem:[%s4 + $0x48] sm:$0xff]
    %v138 = vld [vmem:[%s4 + $0x50] sm:$0xff]
    %v139 = vld [vmem:[%s4 + $0x58] sm:$0xff]
    %v140 = vld [vmem:[%s4 + $0x60] sm:$0xff]
    %v141 = vld [vmem:[%s4 + $0x68] sm:$0xff]
    %v142 = vld [vmem:[%s4 + $0x70] sm:$0xff]
    %v143 = vld [vmem:[%s4 + $0x78] sm:$0xff]
    %v144 = vld [vmem:[%s5] sm:$0x1]
    %v146 = vlaneseq
    %v147 = vshrl.u32 %v146, 7
    %v148 = vsub.s32 0, %v147
    %v149 = vrot.slane %v144, %v148
    %151 = vmatprep.subr.mxu0 0.0
    %152 = vmatpush1.msra.mxu0 %v128
    %153 = vmatprep.subr.mxu0 0.0
    %154 = vmatpush1.msra.mxu0 %v129
    %155 = vmatprep.subr.mxu0 0.0
    %156 = vmatpush1.msra.mxu0 %v130
    %157 = vmatprep.subr.mxu0 0.0
    %158 = vmatpush1.msra.mxu0 %v131
    %159 = vmatprep.subr.mxu0 0.0
    %160 = vmatpush1.msra.mxu0 %v132
    %161 = vmatprep.subr.mxu0 0.0
    %162 = vmatpush1.msra.mxu0 %v133
    %163 = vmatprep.subr.mxu0 0.0
    %164 = vmatpush1.msra.mxu0 %v134
    %165 = vmatprep.subr.mxu0 0.0
    %166 = vmatpush1.msra.mxu0 %v135
    %167 = vmatprep.subr.mxu0 0.0
    %168 = vmatpush1.msra.mxu0 %v136
    %169 = vmatprep.subr.mxu0 0.0
    %170 = vmatpush1.msra.mxu0 %v137
    %171 = vmatprep.subr.mxu0 0.0
    %172 = vmatpush1.msra.mxu0 %v138
    %173 = vmatprep.subr.mxu0 0.0
    %174 = vmatpush1.msra.mxu0 %v139
    %175 = vmatprep.subr.mxu0 0.0
    %176 = vmatpush1.msra.mxu0 %v140
    %177 = vmatprep.subr.mxu0 0.0
    %178 = vmatpush1.msra.mxu0 %v141
    %179 = vmatprep.subr.mxu0 0.0
    %180 = vmatpush1.msra.mxu0 %v142
    %181 = vmatprep.subr.mxu0 0.0
    %182 = vmatpush1.msra.mxu0 %v143
    %183 = vmatprep.subr.mxu0 0.0
    %184 = vmatpush1.msra.mxu0 0.0
    %185 = vmatprep.subr.mxu0 0.0
    %186 = vmatpush1.msra.mxu0 0.0
    %187 = vmatprep.subr.mxu0 0.0
    %188 = vmatpush1.msra.mxu0 0.0
    %189 = vmatprep.subr.mxu0 0.0
    %190 = vmatpush1.msra.mxu0 0.0
    %191 = vmatprep.subr.mxu0 0.0
    %192 = vmatpush1.msra.mxu0 0.0
    %193 = vmatprep.subr.mxu0 0.0
    %194 = vmatpush1.msra.mxu0 0.0
    %195 = vmatprep.subr.mxu0 0.0
    %196 = vmatpush1.msra.mxu0 0.0
    %197 = vmatprep.subr.mxu0 0.0
    %198 = vmatpush1.msra.mxu0 0.0
    %199 = vmatprep.subr.mxu0 0.0
    %200 = vmatpush1.msra.mxu0 0.0
    %201 = vmatprep.subr.mxu0 0.0
    %202 = vmatpush1.msra.mxu0 0.0
    %203 = vmatprep.subr.mxu0 0.0
    %204 = vmatpush1.msra.mxu0 0.0
    %205 = vmatprep.subr.mxu0 0.0
    %206 = vmatpush1.msra.mxu0 0.0
    %207 = vmatprep.subr.mxu0 0.0
    %208 = vmatpush1.msra.mxu0 0.0
    %209 = vmatprep.subr.mxu0 0.0
    %210 = vmatpush1.msra.mxu0 0.0
    %211 = vmatprep.subr.mxu0 0.0
    %212 = vmatpush1.msra.mxu0 0.0
    %213 = vmatprep.subr.mxu0 0.0
    %214 = vmatpush1.msra.mxu0 0.0
    %215 = vmatprep.mubr.f32.mxu0 0.0
    %216 = vmatmul.mubr.f32.gmra.mrb[0].mxu0 %v127
    %v217 = vpop.f32.mrb[0].mxu0
    %v218 = vadd.f32 %v149, %v217
    %v219 = vpop.f32.mrb[0].mxu0
    %220 = vdwg.mxu0
    %v221 = vmax.f32 %v218, 0.0
    %v222 = vld [vmem:[%s6] sm:$0xff]
    %v223 = vld [vmem:[%s6 + $0x8] sm:$0xff]
    %v224 = vld [vmem:[%s6 + $0x10] sm:$0xff]
    %v225 = vld [vmem:[%s6 + $0x18] sm:$0xff]
    %v226 = vld [vmem:[%s6 + $0x20] sm:$0xff]
    %v227 = vld [vmem:[%s6 + $0x28] sm:$0xff]
    %v228 = vld [vmem:[%s6 + $0x30] sm:$0xff]
    %v229 = vld [vmem:[%s6 + $0x38] sm:$0xff]
    %v230 = vld [vmem:[%s6 + $0x40] sm:$0xff]
    %v231 = vld [vmem:[%s6 + $0x48] sm:$0xff]
    %v232 = vld [vmem:[%s6 + $0x50] sm:$0xff]
    %v233 = vld [vmem:[%s6 + $0x58] sm:$0xff]
    %v234 = vld [vmem:[%s6 + $0x60] sm:$0xff]
    %v235 = vld [vmem:[%s6 + $0x68] sm:$0xff]
    %v236 = vld [vmem:[%s6 + $0x70] sm:$0xff]
    %v237 = vld [vmem:[%s6 + $0x78] sm:$0xff]
    %v238 = vld [vmem:[%s7] sm:$0x1]
    %v240 = vlaneseq
    %v241 = vshrl.u32 %v240, 7
    %v242 = vsub.s32 0, %v241
    %v243 = vrot.slane %v238, %v242
    %245 = vmatprep.subr.mxu0 0.0
    %246 = vmatpush1.msra.mxu0 %v222
    %247 = vmatprep.subr.mxu0 0.0
    %248 = vmatpush1.msra.mxu0 %v223
    %249 = vmatprep.subr.mxu0 0.0
    %250 = vmatpush1.msra.mxu0 %v224
    %251 = vmatprep.subr.mxu0 0.0
    %252 = vmatpush1.msra.mxu0 %v225
    %253 = vmatprep.subr.mxu0 0.0
    %254 = vmatpush1.msra.mxu0 %v226
    %255 = vmatprep.subr.mxu0 0.0
    %256 = vmatpush1.msra.mxu0 %v227
    %257 = vmatprep.subr.mxu0 0.0
    %258 = vmatpush1.msra.mxu0 %v228
    %259 = vmatprep.subr.mxu0 0.0
    %260 = vmatpush1.msra.mxu0 %v229
    %261 = vmatprep.subr.mxu0 0.0
    %262 = vmatpush1.msra.mxu0 %v230
    %263 = vmatprep.subr.mxu0 0.0
    %264 = vmatpush1.msra.mxu0 %v231
    %265 = vmatprep.subr.mxu0 0.0
    %266 = vmatpush1.msra.mxu0 %v232
    %267 = vmatprep.subr.mxu0 0.0
    %268 = vmatpush1.msra.mxu0 %v233
    %269 = vmatprep.subr.mxu0 0.0
    %270 = vmatpush1.msra.mxu0 %v234
    %271 = vmatprep.subr.mxu0 0.0
    %272 = vmatpush1.msra.mxu0 %v235
    %273 = vmatprep.subr.mxu0 0.0
    %274 = vmatpush1.msra.mxu0 %v236
    %275 = vmatprep.subr.mxu0 0.0
    %276 = vmatpush1.msra.mxu0 %v237
    %277 = vmatprep.subr.mxu0 0.0
    %278 = vmatpush1.msra.mxu0 0.0
    %279 = vmatprep.subr.mxu0 0.0
    %280 = vmatpush1.msra.mxu0 0.0
    %281 = vmatprep.subr.mxu0 0.0
    %282 = vmatpush1.msra.mxu0 0.0
    %283 = vmatprep.subr.mxu0 0.0
    %284 = vmatpush1.msra.mxu0 0.0
    %285 = vmatprep.subr.mxu0 0.0
    %286 = vmatpush1.msra.mxu0 0.0
    %287 = vmatprep.subr.mxu0 0.0
    %288 = vmatpush1.msra.mxu0 0.0
    %289 = vmatprep.subr.mxu0 0.0
    %290 = vmatpush1.msra.mxu0 0.0
    %291 = vmatprep.subr.mxu0 0.0
    %292 = vmatpush1.msra.mxu0 0.0
    %293 = vmatprep.subr.mxu0 0.0
    %294 = vmatpush1.msra.mxu0 0.0
    %295 = vmatprep.subr.mxu0 0.0
    %296 = vmatpush1.msra.mxu0 0.0
    %297 = vmatprep.subr.mxu0 0.0
    %298 = vmatpush1.msra.mxu0 0.0
    %299 = vmatprep.subr.mxu0 0.0
    %300 = vmatpush1.msra.mxu0 0.0
    %301 = vmatprep.subr.mxu0 0.0
    %302 = vmatpush1.msra.mxu0 0.0
    %303 = vmatprep.subr.mxu0 0.0
    %304 = vmatpush1.msra.mxu0 0.0
    %305 = vmatprep.subr.mxu0 0.0
    %306 = vmatpush1.msra.mxu0 0.0
    %307 = vmatprep.subr.mxu0 0.0
    %308 = vmatpush1.msra.mxu0 0.0
    %309 = vmatprep.mubr.f32.mxu0 0.0
    %310 = vmatmul.mubr.f32.gmra.mrb[0].mxu0 %v221
    %v311 = vpop.f32.mrb[0].mxu0
    %v312 = vadd.f32 %v243, %v311
    %v313 = vpop.f32.mrb[0].mxu0
    %314 = vdwg.mxu0
    %v315 = vtanh.pop %v312
    %v316 = vstv %s42
    %v317 = vmul.f32 %v316, %v315
    %vm318 = vcmask 31744
    %319 = vst.msk [vmem:[%s8] sm:$0xff] %vm318, %v317
    // Predicated region
    $region38: #{tpu_custom_call.1} parent=1 // pred_check
      _
    $region39: #{tpu_custom_call.1} parent=1 // pred_check_branch
      %321 = sbr.rel (0) target = $region41
    $region40: #{tpu_custom_call.1} parent=1 // pred_region
      _
    $region41: #{tpu_custom_call.1} parent=1 // pred_fallthru
      _
    // Predicated region
    $region42: #{tpu_custom_call.1} parent=1 // pred_check
      _
    $region43: #{tpu_custom_call.1} parent=1 // pred_check_branch
      %323 = sbr.rel (0) target = $region45
    $region44: #{tpu_custom_call.1} parent=1 // pred_region
      _
    $region45: #{tpu_custom_call.1} parent=1 // pred_fallthru
      _
    %324 = vsyncpa [#allocation4], 1

</llo_original>
